<compile_context>
chip_gen: v7x
topology: tpu7x:2x2x1
jax: 0.10.0
libtpu: 0.0.40
codegen_flags: <defaults>
</compile_context>

<pallas_src>
import functools

import jax
import jax.numpy as jnp
from jax.experimental import pallas as pl
from jax.experimental.pallas import tpu as pltpu


def _round_up(x, m):
    return (x + m - 1) // m * m


def _cdiv(a, b):
    return -(-a // b)


def _neumf_kernel(x_ref,
                  w1_ref, b1_ref,
                  w2_ref, b2_ref,
                  w3_ref, b3_ref,
                  wng_ref, wnm_ref, bn_ref,
                  out_ref, *, emb_dim, gmf_dtype):
    f32 = jnp.float32
    bf16 = jnp.bfloat16
    D = emb_dim

    # Feature-major activations: [4D, TB] bf16. Static sublane slices (free).
    gu = x_ref[0:D, :]                      # [D,  TB] gmf user
    gi = x_ref[D:2 * D, :]                  # [D,  TB] gmf item
    mlp = x_ref[2 * D:4 * D, :]             # [2D, TB] cat(mlp user, mlp item)

    # GMF branch (VPU): bf16 product on v6e/v7x, f32 on v5e. The GMF vector is
    # only consumed by the final linear layer, so fold it straight into the
    # wng-weighted sublane reduction (f32 accumulate), producing [1, TB].
    prod = gu.astype(gmf_dtype) * gi.astype(gmf_dtype)
    gmf_logit = jnp.sum(prod.astype(f32) * wng_ref[...], axis=0, keepdims=True)

    # MLP tail, feature-major (MXU, bf16 operands, f32 accumulation). All
    # intermediates are [out, TB] => fully lane-dense bias / ReLU / casts.
    h = jnp.dot(w1_ref[...], mlp, preferred_element_type=f32) + b1_ref[...]
    h = jnp.maximum(h, 0.0)                                       # [64, TB]
    h = jnp.dot(w2_ref[...], h.astype(bf16), preferred_element_type=f32) + b2_ref[...]
    h = jnp.maximum(h, 0.0)                                       # [32, TB]
    h = jnp.dot(w3_ref[...], h.astype(bf16), preferred_element_type=f32) + b3_ref[...]
    h = jnp.maximum(h, 0.0)                                       # [16, TB]

    mlp_logit = jnp.sum(h * wnm_ref[...], axis=0, keepdims=True)  # [1, TB]

    logit = gmf_logit + mlp_logit + bn_ref[...]                   # [1, TB]

    # Sigmoid: exp on the EUP + approx reciprocal (EUP vrcp) — lane-dense.
    sig = pl.reciprocal(1.0 + jnp.exp(-logit), approx=True)
    out_ref[...] = sig[None]                                      # [1, 1, TB]


def neumf_forward(params, users, items, *, block_b=8192):
    """users, items: int32 [B]. Returns sigmoid predictions, shape [B]."""
    bf16 = jnp.bfloat16
    f32 = jnp.float32
    D = params["gmf_user_emb"].shape[1]

    # TODO(synk): the embedding gather is data-dependent HBM access; at D=64
    # (256 B rows) keeping it in XLA is the right call — a fused in-kernel DMA
    # gather only pays off for D >= ~256.
    gu = jnp.take(params["gmf_user_emb"], users, axis=0)
    gi = jnp.take(params["gmf_item_emb"], items, axis=0)
    mu = jnp.take(params["mlp_user_emb"], users, axis=0)
    mi = jnp.take(params["mlp_item_emb"], items, axis=0)
    # Single merged activation slab; the XLA-side transpose to feature-major
    # costs one fused relayout pass but makes every kernel op and the output
    # store fully lane-dense (batch rides the 128-lane axis).
    acts = jnp.concatenate([gu, gi, mu, mi], axis=1).astype(bf16)   # [B, 4D]

    B = users.shape[0]

    # Chip-generation flags (trace-time; perf-only, both paths are correct).
    kind = ""
    try:
        kind = jax.devices()[0].device_kind.lower()
    except Exception:
        pass
    is_v7 = ("v7" in kind) or ("7x" in kind)
    gmf_dtype = bf16 if any(t in kind for t in ("v6", "v7", "7x")) else f32

    # Divisor-aware batch tiling: lanes need multiples of 128; padding <= 127
    # rows. On v7x keep >= 2 tiles so both TensorCores get work.
    num_tiles = max(1, _cdiv(B, block_b))
    if is_v7 and B >= 256:
        num_tiles = max(num_tiles, 2)
    tb = _round_up(_cdiv(B, num_tiles), 128)
    b_pad = tb * num_tiles
    if b_pad != B:
        acts = jnp.pad(acts, ((0, b_pad - B), (0, 0)))
    acts_t = acts.T                                                 # [4D, B_pad]

    # Weights in PyTorch nn.Linear layout [out, in]; MXU operands in bf16,
    # biases / final-layer rows in f32 (columns, broadcast over lanes).
    w1 = params["fc1_w"].astype(bf16)                # [64, 2D]
    w2 = params["fc2_w"].astype(bf16)                # [32, 64]
    w3 = params["fc3_w"].astype(bf16)                # [16, 32]
    b1 = params["fc1_b"].reshape(-1, 1).astype(f32)  # [64, 1]
    b2 = params["fc2_b"].reshape(-1, 1).astype(f32)  # [32, 1]
    b3 = params["fc3_b"].reshape(-1, 1).astype(f32)  # [16, 1]
    wn = params["neuMF_w"].astype(f32)               # [1, D + 16]
    wng = wn[0, :D].reshape(D, 1)                    # [D, 1]
    wnm = wn[0, D:].reshape(-1, 1)                   # [16, 1]
    bn = params["neuMF_b"].reshape(1, 1).astype(f32) # [1, 1]

    def cspec(r, c):
        return pl.BlockSpec((r, c), lambda i: (0, 0))

    grid = (num_tiles,)
    in_specs = [
        pl.BlockSpec((4 * D, tb), lambda i: (0, i)),   # activations (tiled)
        cspec(*w1.shape), cspec(*b1.shape),
        cspec(*w2.shape), cspec(*b2.shape),
        cspec(*w3.shape), cspec(*b3.shape),
        cspec(*wng.shape), cspec(*wnm.shape), cspec(*bn.shape),
    ]
    # Lane-dense output: one [1, tb] row per tile (wrapped in a unit dim so the
    # block equals the full array extent on the last two dims).
    out_specs = pl.BlockSpec((1, 1, tb), lambda i: (i, 0, 0))

    kernel = functools.partial(_neumf_kernel, emb_dim=D, gmf_dtype=gmf_dtype)

    flops_per_row = 2 * (2 * D * 64 + 64 * 32 + 32 * 16) + 4 * D + 4 * 16
    weight_bytes = (64 * 2 * D + 32 * 64 + 16 * 32) * 2 \
        + (64 + 32 + 16 + D + 16 + 1) * 4
    cost = pl.CostEstimate(
        flops=b_pad * flops_per_row,
        transcendentals=b_pad,
        bytes_accessed=b_pad * (4 * D * 2 + 4) + weight_bytes,
    )

    out = pl.pallas_call(
        kernel,
        out_shape=jax.ShapeDtypeStruct((num_tiles, 1, tb), f32),
        grid=grid,
        in_specs=in_specs,
        out_specs=out_specs,
        compiler_params=pltpu.CompilerParams(
            dimension_semantics=("parallel",),
            vmem_limit_bytes=32 * 1024 * 1024,
        ),
        cost_estimate=cost,
    )(acts_t, w1, b1, w2, b2, w3, b3, wng, wnm, bn)

    return out.reshape(b_pad)[:B]                     # .squeeze()


def _xavier_uniform(key, shape):
    fan_out, fan_in = shape[0], shape[1]
    bound = (6.0 / (fan_in + fan_out)) ** 0.5
    return jax.random.uniform(key, shape, jnp.float32, -bound, bound)


def init_params(key, n_users, n_items, emb_dim=64):
    ks = jax.random.split(key, 8)
    return {
        "gmf_user_emb": _xavier_uniform(ks[0], (n_users, emb_dim)),
        "gmf_item_emb": _xavier_uniform(ks[1], (n_items, emb_dim)),
        "mlp_user_emb": _xavier_uniform(ks[2], (n_users, emb_dim)),
        "mlp_item_emb": _xavier_uniform(ks[3], (n_items, emb_dim)),
        # Linear weights in PyTorch nn.Linear layout: [out_features, in_features].
        "fc1_w": _xavier_uniform(ks[4], (64, emb_dim * 2)),
        "fc1_b": jnp.zeros((64,), jnp.float32),
        "fc2_w": _xavier_uniform(ks[5], (32, 64)),
        "fc2_b": jnp.zeros((32,), jnp.float32),
        "fc3_w": _xavier_uniform(ks[6], (16, 32)),
        "fc3_b": jnp.zeros((16,), jnp.float32),
        "neuMF_w": _xavier_uniform(ks[7], (1, emb_dim + 16)),
        "neuMF_b": jnp.zeros((1,), jnp.float32),
    }


def neumf_reference(params, users, items):
    """Pure f32 reference matching the PyTorch module exactly."""
    gu = jnp.take(params["gmf_user_emb"], users, axis=0)
    gi = jnp.take(params["gmf_item_emb"], items, axis=0)
    mu = jnp.take(params["mlp_user_emb"], users, axis=0)
    mi = jnp.take(params["mlp_item_emb"], items, axis=0)
    gmf = gu * gi
    x = jnp.concatenate([mu, mi], axis=1)
    x = jax.nn.relu(x @ params["fc1_w"].T + params["fc1_b"])
    x = jax.nn.relu(x @ params["fc2_w"].T + params["fc2_b"])
    x = jax.nn.relu(x @ params["fc3_w"].T + params["fc3_b"])
    v = jnp.concatenate([gmf, x], axis=1)
    return jax.nn.sigmoid(v @ params["neuMF_w"].T + params["neuMF_b"])[:, 0]


if __name__ == "__main__":
    key = jax.random.PRNGKey(0)
    # Small shapes; batch=10 also exercises the padded-tail path (pads to 128).
    n_users, n_items, emb_dim, batch = 10, 12, 64, 10

    pkey, ukey, ikey = jax.random.split(key, 3)
    params = init_params(pkey, n_users, n_items, emb_dim)
    users = jax.random.randint(ukey, (batch,), 0, n_users, dtype=jnp.int32)
    items = jax.random.randint(ikey, (batch,), 0, n_items, dtype=jnp.int32)

    pred = jax.block_until_ready(
        jax.jit(functools.partial(neumf_forward, params))(users, items))
    ref = jax.block_until_ready(neumf_reference(params, users, items))

    assert pred.shape == (batch,)
    # bf16 kernel inputs + approx reciprocal => loosened tolerance vs f32 ref.
    assert jnp.allclose(pred, ref, atol=2e-2, rtol=2e-2), (pred, ref)
    print("KERNEL_OK")
</pallas_src>

<mosaic_0001>
module attributes {stable_mosaic.version = 11 : i64} {
  func.func @_neumf_kernel(%arg0: i32, %arg1: memref<256x128xbf16, #tpu.memory_space<vmem>>, %arg2: memref<64x128xbf16, #tpu.memory_space<vmem>>, %arg3: memref<64x1xf32, #tpu.memory_space<vmem>>, %arg4: memref<32x64xbf16, #tpu.memory_space<vmem>>, %arg5: memref<32x1xf32, #tpu.memory_space<vmem>>, %arg6: memref<16x32xbf16, #tpu.memory_space<vmem>>, %arg7: memref<16x1xf32, #tpu.memory_space<vmem>>, %arg8: memref<64x1xf32, #tpu.memory_space<vmem>>, %arg9: memref<16x1xf32, #tpu.memory_space<vmem>>, %arg10: memref<1x1xf32, #tpu.memory_space<vmem>>, %arg11: memref<1x1x128xf32, #tpu.memory_space<vmem>>) attributes {dimension_semantics = [#tpu.dimension_semantics<parallel>], iteration_bounds = array<i64: 1>, scalar_prefetch = 0 : i64, scratch_operands = 0 : i64, tpu.core_type = #tpu.core_type<tc>, window_params = [{transform_indices = @transform_0, window_bounds = array<i64: 256, 128>}, {pipeline_mode = #tpu.pipeline_mode<synchronous>, transform_indices = @transform_1, window_bounds = array<i64: 64, 128>}, {pipeline_mode = #tpu.pipeline_mode<synchronous>, transform_indices = @transform_2, window_bounds = array<i64: 64, 1>}, {pipeline_mode = #tpu.pipeline_mode<synchronous>, transform_indices = @transform_3, window_bounds = array<i64: 32, 64>}, {pipeline_mode = #tpu.pipeline_mode<synchronous>, transform_indices = @transform_4, window_bounds = array<i64: 32, 1>}, {pipeline_mode = #tpu.pipeline_mode<synchronous>, transform_indices = @transform_5, window_bounds = array<i64: 16, 32>}, {pipeline_mode = #tpu.pipeline_mode<synchronous>, transform_indices = @transform_6, window_bounds = array<i64: 16, 1>}, {pipeline_mode = #tpu.pipeline_mode<synchronous>, transform_indices = @transform_7, window_bounds = array<i64: 64, 1>}, {pipeline_mode = #tpu.pipeline_mode<synchronous>, transform_indices = @transform_8, window_bounds = array<i64: 16, 1>}, {pipeline_mode = #tpu.pipeline_mode<synchronous>, transform_indices = @transform_9, window_bounds = array<i64: 1, 1>}, {transform_indices = @transform_10, window_bounds = array<i64: 1, 1, 128>}]} {
    %c0 = arith.constant 0 : index
    %c0_0 = arith.constant 0 : index
    %0 = vector.load %arg1[%c0, %c0_0] : memref<256x128xbf16, #tpu.memory_space<vmem>>, vector<64x128xbf16>
    %c64 = arith.constant 64 : index
    %c0_1 = arith.constant 0 : index
    %1 = vector.load %arg1[%c64, %c0_1] : memref<256x128xbf16, #tpu.memory_space<vmem>>, vector<64x128xbf16>
    %c128 = arith.constant 128 : index
    %c0_2 = arith.constant 0 : index
    %2 = vector.load %arg1[%c128, %c0_2] : memref<256x128xbf16, #tpu.memory_space<vmem>>, vector<128x128xbf16>
    %3 = arith.extf %0 : vector<64x128xbf16> to vector<64x128xf32>
    %4 = arith.extf %1 : vector<64x128xbf16> to vector<64x128xf32>
    %5 = arith.mulf %3, %4 : vector<64x128xf32>
    %c0_3 = arith.constant 0 : index
    %c0_4 = arith.constant 0 : index
    %6 = vector.load %arg8[%c0_3, %c0_4] : memref<64x1xf32, #tpu.memory_space<vmem>>, vector<64x1xf32>
    %7 = vector.broadcast %6 : vector<64x1xf32> to vector<64x128xf32>
    %8 = arith.mulf %5, %7 : vector<64x128xf32>
    %cst = arith.constant dense<0.000000e+00> : vector<128xf32>
    %9 = vector.multi_reduction <add>, %8, %cst [0] : vector<64x128xf32> to vector<128xf32>
    %10 = vector.shape_cast %9 : vector<128xf32> to vector<1x128xf32>
    %c0_5 = arith.constant 0 : index
    %c0_6 = arith.constant 0 : index
    %11 = vector.load %arg2[%c0_5, %c0_6] : memref<64x128xbf16, #tpu.memory_space<vmem>>, vector<64x128xbf16>
    %cst_7 = arith.constant dense<0.000000e+00> : vector<64x128xf32>
    %12 = tpu.matmul %11, %2, %cst_7 {dimension_numbers = #tpu.dot_dimension_numbers<[1], [0], [0], [1], [0, 0, 1, 1], [], []>} : vector<64x128xbf16>, vector<128x128xbf16>, vector<64x128xf32> -> vector<64x128xf32>
    %c0_8 = arith.constant 0 : index
    %c0_9 = arith.constant 0 : index
    %13 = vector.load %arg3[%c0_8, %c0_9] : memref<64x1xf32, #tpu.memory_space<vmem>>, vector<64x1xf32>
    %14 = vector.broadcast %13 : vector<64x1xf32> to vector<64x128xf32>
    %15 = arith.addf %12, %14 : vector<64x128xf32>
    %cst_10 = arith.constant 0.000000e+00 : f32
    %16 = vector.broadcast %cst_10 : f32 to vector<64x128xf32>
    %17 = arith.maximumf %15, %16 : vector<64x128xf32>
    %c0_11 = arith.constant 0 : index
    %c0_12 = arith.constant 0 : index
    %18 = vector.load %arg4[%c0_11, %c0_12] : memref<32x64xbf16, #tpu.memory_space<vmem>>, vector<32x64xbf16>
    %19 = arith.truncf %17 : vector<64x128xf32> to vector<64x128xbf16>
    %cst_13 = arith.constant dense<0.000000e+00> : vector<32x128xf32>
    %20 = tpu.matmul %18, %19, %cst_13 {dimension_numbers = #tpu.dot_dimension_numbers<[1], [0], [0], [1], [0, 0, 1, 1], [], []>} : vector<32x64xbf16>, vector<64x128xbf16>, vector<32x128xf32> -> vector<32x128xf32>
    %c0_14 = arith.constant 0 : index
    %c0_15 = arith.constant 0 : index
    %21 = vector.load %arg5[%c0_14, %c0_15] : memref<32x1xf32, #tpu.memory_space<vmem>>, vector<32x1xf32>
    %22 = vector.broadcast %21 : vector<32x1xf32> to vector<32x128xf32>
    %23 = arith.addf %20, %22 : vector<32x128xf32>
    %cst_16 = arith.constant 0.000000e+00 : f32
    %24 = vector.broadcast %cst_16 : f32 to vector<32x128xf32>
    %25 = arith.maximumf %23, %24 : vector<32x128xf32>
    %c0_17 = arith.constant 0 : index
    %c0_18 = arith.constant 0 : index
    %26 = vector.load %arg6[%c0_17, %c0_18] : memref<16x32xbf16, #tpu.memory_space<vmem>>, vector<16x32xbf16>
    %27 = arith.truncf %25 : vector<32x128xf32> to vector<32x128xbf16>
    %cst_19 = arith.constant dense<0.000000e+00> : vector<16x128xf32>
    %28 = tpu.matmul %26, %27, %cst_19 {dimension_numbers = #tpu.dot_dimension_numbers<[1], [0], [0], [1], [0, 0, 1, 1], [], []>} : vector<16x32xbf16>, vector<32x128xbf16>, vector<16x128xf32> -> vector<16x128xf32>
    %c0_20 = arith.constant 0 : index
    %c0_21 = arith.constant 0 : index
    %29 = vector.load %arg7[%c0_20, %c0_21] : memref<16x1xf32, #tpu.memory_space<vmem>>, vector<16x1xf32>
    %30 = vector.broadcast %29 : vector<16x1xf32> to vector<16x128xf32>
    %31 = arith.addf %28, %30 : vector<16x128xf32>
    %cst_22 = arith.constant 0.000000e+00 : f32
    %32 = vector.broadcast %cst_22 : f32 to vector<16x128xf32>
    %33 = arith.maximumf %31, %32 : vector<16x128xf32>
    %c0_23 = arith.constant 0 : index
    %c0_24 = arith.constant 0 : index
    %34 = vector.load %arg9[%c0_23, %c0_24] : memref<16x1xf32, #tpu.memory_space<vmem>>, vector<16x1xf32>
    %35 = vector.broadcast %34 : vector<16x1xf32> to vector<16x128xf32>
    %36 = arith.mulf %33, %35 : vector<16x128xf32>
    %cst_25 = arith.constant dense<0.000000e+00> : vector<128xf32>
    %37 = vector.multi_reduction <add>, %36, %cst_25 [0] : vector<16x128xf32> to vector<128xf32>
    %38 = vector.shape_cast %37 : vector<128xf32> to vector<1x128xf32>
    %39 = arith.addf %10, %38 : vector<1x128xf32>
    %c0_26 = arith.constant 0 : index
    %c0_27 = arith.constant 0 : index
    %40 = vector.load %arg10[%c0_26, %c0_27] : memref<1x1xf32, #tpu.memory_space<vmem>>, vector<1x1xf32>
    %41 = vector.broadcast %40 : vector<1x1xf32> to vector<1x128xf32>
    %42 = arith.addf %39, %41 : vector<1x128xf32>
    %cst_28 = arith.constant 0.000000e+00 : f32
    %43 = vector.broadcast %cst_28 : f32 to vector<1x128xf32>
    %44 = arith.subf %43, %42 : vector<1x128xf32>
    %45 = math.exp %44 : vector<1x128xf32>
    %cst_29 = arith.constant 1.000000e+00 : f32
    %46 = vector.broadcast %cst_29 : f32 to vector<1x128xf32>
    %47 = arith.addf %46, %45 : vector<1x128xf32>
    %48 = tpu.reciprocal %47 {approx = true} : vector<1x128xf32> -> vector<1x128xf32>
    %49 = vector.shape_cast %48 : vector<1x128xf32> to vector<1x1x128xf32>
    %c0_30 = arith.constant 0 : index
    %c0_31 = arith.constant 0 : index
    %c0_32 = arith.constant 0 : index
    %50 = vector.load %arg11[%c0_30, %c0_31, %c0_32] : memref<1x1x128xf32, #tpu.memory_space<vmem>>, vector<1x1x128xf32>
    tpu.vector_store %arg11[%c0_30, %c0_31, %c0_32], %49 {strides = array<i32>} : memref<1x1x128xf32, #tpu.memory_space<vmem>>, vector<1x1x128xf32>,
    return
  }
  func.func @transform_0(%arg0: i32) -> (i32, i32) {
    %c0_i32 = arith.constant 0 : i32
    %c0_i32_0 = arith.constant 0 : i32
    return %c0_i32, %arg0 : i32, i32
  }
  func.func @transform_1(%arg0: i32) -> (i32, i32) {
    %c0_i32 = arith.constant 0 : i32
    %c0_i32_0 = arith.constant 0 : i32
    %c0_i32_1 = arith.constant 0 : i32
    return %c0_i32, %c0_i32_0 : i32, i32
  }
  func.func @transform_2(%arg0: i32) -> (i32, i32) {
    %c0_i32 = arith.constant 0 : i32
    %c0_i32_0 = arith.constant 0 : i32
    %c0_i32_1 = arith.constant 0 : i32
    return %c0_i32, %c0_i32_0 : i32, i32
  }
  func.func @transform_3(%arg0: i32) -> (i32, i32) {
    %c0_i32 = arith.constant 0 : i32
    %c0_i32_0 = arith.constant 0 : i32
    %c0_i32_1 = arith.constant 0 : i32
    return %c0_i32, %c0_i32_0 : i32, i32
  }
  func.func @transform_4(%arg0: i32) -> (i32, i32) {
    %c0_i32 = arith.constant 0 : i32
    %c0_i32_0 = arith.constant 0 : i32
    %c0_i32_1 = arith.constant 0 : i32
    return %c0_i32, %c0_i32_0 : i32, i32
  }
  func.func @transform_5(%arg0: i32) -> (i32, i32) {
    %c0_i32 = arith.constant 0 : i32
    %c0_i32_0 = arith.constant 0 : i32
    %c0_i32_1 = arith.constant 0 : i32
    return %c0_i32, %c0_i32_0 : i32, i32
  }
  func.func @transform_6(%arg0: i32) -> (i32, i32) {
    %c0_i32 = arith.constant 0 : i32
    %c0_i32_0 = arith.constant 0 : i32
    %c0_i32_1 = arith.constant 0 : i32
    return %c0_i32, %c0_i32_0 : i32, i32
  }
  func.func @transform_7(%arg0: i32) -> (i32, i32) {
    %c0_i32 = arith.constant 0 : i32
    %c0_i32_0 = arith.constant 0 : i32
    %c0_i32_1 = arith.constant 0 : i32
    return %c0_i32, %c0_i32_0 : i32, i32
  }
  func.func @transform_8(%arg0: i32) -> (i32, i32) {
    %c0_i32 = arith.constant 0 : i32
    %c0_i32_0 = arith.constant 0 : i32
    %c0_i32_1 = arith.constant 0 : i32
    return %c0_i32, %c0_i32_0 : i32, i32
  }
  func.func @transform_9(%arg0: i32) -> (i32, i32) {
    %c0_i32 = arith.constant 0 : i32
    %c0_i32_0 = arith.constant 0 : i32
    %c0_i32_1 = arith.constant 0 : i32
    return %c0_i32, %c0_i32_0 : i32, i32
  }
  func.func @transform_10(%arg0: i32) -> (i32, i32, i32) {
    %c0_i32 = arith.constant 0 : i32
    %c0_i32_0 = arith.constant 0 : i32
    %c0_i32_1 = arith.constant 0 : i32
    return %arg0, %c0_i32, %c0_i32_0 : i32, i32, i32
  }
}

</mosaic_0001>

<llo_original>
// kernel: neumf_forward.1
$region0: #{neumf_forward.1}
  #allocation0 [shape = 'u32[]', space=smem, size = 0x4, offset = 0x4, fixed_abs, tag = 'smem constant byte address 0x4 - core index']
  #allocation1 [shape = 'u32[144,128]{1,0:T(1,128)}', space=vmem, size = 0x12000, scoped, tag = 'internal scratch']
  #allocation2 [shape = 'f32[1,1]{1,0:T(1,128)S(1)}', space=vmem, size = 0x200, scoped, tag = 'scoped memory for neumf_forward.1']
  %s0 = inlined_call_operand.vmem [shape: bf16[256,128], index: 0, kind: input, shape index: {}]
  %s1 = inlined_call_operand.vmem [shape: bf16[64,128], index: 1, kind: input, shape index: {}]
  %s2 = inlined_call_operand.vmem [shape: f32[64,1], index: 2, kind: input, shape index: {}]
  %s3 = inlined_call_operand.vmem [shape: bf16[32,64], index: 3, kind: input, shape index: {}]
  %s4 = inlined_call_operand.vmem [shape: f32[32,1], index: 4, kind: input, shape index: {}]
  %s5 = inlined_call_operand.vmem [shape: bf16[16,32], index: 5, kind: input, shape index: {}]
  %s6 = inlined_call_operand.vmem [shape: f32[16,1], index: 6, kind: input, shape index: {}]
  %s7 = inlined_call_operand.vmem [shape: f32[64,1], index: 7, kind: input, shape index: {}]
  %s8 = inlined_call_operand.vmem [shape: f32[16,1], index: 8, kind: input, shape index: {}]
  %s9 = inlined_call_operand.<no memory space> [shape: f32[1,1], index: 9, kind: input, shape index: {}]
  %s10 = inlined_call_operand.vmem [shape: f32[1,1,128], index: 10, kind: output, shape index: {}]
  %s11 = sld [smem:[#allocation0]]
  $region50: #{neumf_forward.1} parent=0
    _
  %s13 = ssub.s32 1, %s11
  %s14 = scalar_select 0, %s13, %s11
  %v15 = vstv %s9
  %16 = vst [vmem:[#allocation2] sm:$0x1] %v15
  // Predicated region
  $region2: #{neumf_forward.1} parent=0 // pred_check
    _
  $region3: #{neumf_forward.1} parent=0 // pred_check_branch
    %18 = sbr.rel (0) target = $region5
  $region4: #{neumf_forward.1} parent=0 // pred_region
    _
  $region5: #{neumf_forward.1} parent=0 // pred_fallthru
    _
  // Predicated region
  $region6: #{neumf_forward.1} parent=0 // pred_check
    _
  $region7: #{neumf_forward.1} parent=0 // pred_check_branch
    %20 = sbr.rel (0) target = $region9
  $region8: #{neumf_forward.1} parent=0 // pred_region
    _
  $region9: #{neumf_forward.1} parent=0 // pred_fallthru
    _
  // Predicated region
  $region10: #{neumf_forward.1} parent=0 // pred_check
    _
  $region11: #{neumf_forward.1} parent=0 // pred_check_branch
    %22 = sbr.rel (0) target = $region13
  $region12: #{neumf_forward.1} parent=0 // pred_region
    _
  $region13: #{neumf_forward.1} parent=0 // pred_fallthru
    _
  // Predicated region
  $region14: #{neumf_forward.1} parent=0 // pred_check
    _
  $region15: #{neumf_forward.1} parent=0 // pred_check_branch
    %24 = sbr.rel (0) target = $region17
  $region16: #{neumf_forward.1} parent=0 // pred_region
    _
  $region17: #{neumf_forward.1} parent=0 // pred_fallthru
    _
  // Predicated region
  $region18: #{neumf_forward.1} parent=0 // pred_check
    _
  $region19: #{neumf_forward.1} parent=0 // pred_check_branch
    %26 = sbr.rel (0) target = $region21
  $region20: #{neumf_forward.1} parent=0 // pred_region
    _
  $region21: #{neumf_forward.1} parent=0 // pred_fallthru
    _
  // Predicated region
  $region22: #{neumf_forward.1} parent=0 // pred_check
    _
  $region23: #{neumf_forward.1} parent=0 // pred_check_branch
    %28 = sbr.rel (0) target = $region25
  $region24: #{neumf_forward.1} parent=0 // pred_region
    _
  $region25: #{neumf_forward.1} parent=0 // pred_fallthru
    _
  // Predicated region
  $region26: #{neumf_forward.1} parent=0 // pred_check
    _
  $region27: #{neumf_forward.1} parent=0 // pred_check_branch
    %30 = sbr.rel (0) target = $region29
  $region28: #{neumf_forward.1} parent=0 // pred_region
    _
  $region29: #{neumf_forward.1} parent=0 // pred_fallthru
    _
  // Predicated region
  $region30: #{neumf_forward.1} parent=0 // pred_check
    _
  $region31: #{neumf_forward.1} parent=0 // pred_check_branch
    %32 = sbr.rel (0) target = $region33
  $region32: #{neumf_forward.1} parent=0 // pred_region
    _
  $region33: #{neumf_forward.1} parent=0 // pred_fallthru
    _
  // Predicated region
  $region34: #{neumf_forward.1} parent=0 // pred_check
    _
  $region35: #{neumf_forward.1} parent=0 // pred_check_branch
    %34 = sbr.rel (0) target = $region37
  $region36: #{neumf_forward.1} parent=0 // pred_region
    _
  $region37: #{neumf_forward.1} parent=0 // pred_fallthru
    _
  // Predicated region
  $region38: #{neumf_forward.1} parent=0 // pred_check
    _
  $region39: #{neumf_forward.1} parent=0 // pred_check_branch
    %36 = sbr.rel (0) target = $region41
  $region40: #{neumf_forward.1} parent=0 // pred_region
    _
  $region41: #{neumf_forward.1} parent=0 // pred_fallthru
    _
  %v38 = vld [vmem:[%s0] sm:$0xf]
  %v39 = vld [vmem:[%s0 + $0x4] sm:$0xf]
  %v40 = vld [vmem:[%s0 + $0x8] sm:$0xf]
  %v41 = vld [vmem:[%s0 + $0xc] sm:$0xf]
  %v42 = vld [vmem:[%s0 + $0x10] sm:$0xf]
  %v43 = vld [vmem:[%s0 + $0x14] sm:$0xf]
  %v44 = vld [vmem:[%s0 + $0x18] sm:$0xf]
  %v45 = vld [vmem:[%s0 + $0x1c] sm:$0xf]
  %v46 = vld [vmem:[%s0 + $0x20] sm:$0xf]
  %v47 = vld [vmem:[%s0 + $0x24] sm:$0xf]
  %v48 = vld [vmem:[%s0 + $0x28] sm:$0xf]
  %v49 = vld [vmem:[%s0 + $0x2c] sm:$0xf]
  %v50 = vld [vmem:[%s0 + $0x30] sm:$0xf]
  %v51 = vld [vmem:[%s0 + $0x34] sm:$0xf]
  %v52 = vld [vmem:[%s0 + $0x38] sm:$0xf]
  %v53 = vld [vmem:[%s0 + $0x3c] sm:$0xf]
  %v54 = vld [vmem:[%s0 + $0x40] sm:$0xf]
  %v55 = vld [vmem:[%s0 + $0x44] sm:$0xf]
  %v56 = vld [vmem:[%s0 + $0x48] sm:$0xf]
  %v57 = vld [vmem:[%s0 + $0x4c] sm:$0xf]
  %v58 = vld [vmem:[%s0 + $0x50] sm:$0xf]
  %v59 = vld [vmem:[%s0 + $0x54] sm:$0xf]
  %v60 = vld [vmem:[%s0 + $0x58] sm:$0xf]
  %v61 = vld [vmem:[%s0 + $0x5c] sm:$0xf]
  %v62 = vld [vmem:[%s0 + $0x60] sm:$0xf]
  %v63 = vld [vmem:[%s0 + $0x64] sm:$0xf]
  %v64 = vld [vmem:[%s0 + $0x68] sm:$0xf]
  %v65 = vld [vmem:[%s0 + $0x6c] sm:$0xf]
  %v66 = vld [vmem:[%s0 + $0x70] sm:$0xf]
  %v67 = vld [vmem:[%s0 + $0x74] sm:$0xf]
  %v68 = vld [vmem:[%s0 + $0x78] sm:$0xf]
  %v69 = vld [vmem:[%s0 + $0x7c] sm:$0xf]
  %v70 = vunpack.c.l.bf16 %v38
  %v71 = vunpack.c.l.bf16 %v39
  %v72 = vunpack.c.l.bf16 %v40
  %v73 = vunpack.c.l.bf16 %v41
  %v74 = vunpack.c.l.bf16 %v42
  %v75 = vunpack.c.l.bf16 %v43
  %v76 = vunpack.c.l.bf16 %v44
  %v77 = vunpack.c.l.bf16 %v45
  %v78 = vunpack.c.l.bf16 %v46
  %v79 = vunpack.c.l.bf16 %v47
  %v80 = vunpack.c.l.bf16 %v48
  %v81 = vunpack.c.l.bf16 %v49
  %v82 = vunpack.c.l.bf16 %v50
  %v83 = vunpack.c.l.bf16 %v51
  %v84 = vunpack.c.l.bf16 %v52
  %v85 = vunpack.c.l.bf16 %v53
  %v86 = vmul.f32 %v70, %v78
  %v87 = vmul.f32 %v71, %v79
  %v88 = vmul.f32 %v72, %v80
  %v89 = vmul.f32 %v73, %v81
  %v90 = vmul.f32 %v74, %v82
  %v91 = vmul.f32 %v75, %v83
  %v92 = vmul.f32 %v76, %v84
  %v93 = vmul.f32 %v77, %v85
  %v94 = vld [vmem:[%s7] sm:$0xff]
  %v95 = vld [vmem:[%s7 + $0x8] sm:$0xff]
  %v96 = vld [vmem:[%s7 + $0x10] sm:$0xff]
  %v97 = vld [vmem:[%s7 + $0x18] sm:$0xff]
  %v98 = vld [vmem:[%s7 + $0x20] sm:$0xff]
  %v99 = vld [vmem:[%s7 + $0x28] sm:$0xff]
  %v100 = vld [vmem:[%s7 + $0x30] sm:$0xff]
  %v101 = vld [vmem:[%s7 + $0x38] sm:$0xff]
  %103 = vset.pattern.permute.xlu0 0
  %104 = vperm.xlu0 %103, %v94
  %v105 = vpop.permute.xlu0 %104
  %108 = vset.pattern.permute.xlu0 0
  %109 = vperm.xlu0 %108, %v95
  %v110 = vpop.permute.xlu0 %109
  %113 = vset.pattern.permute.xlu0 0
  %114 = vperm.xlu0 %113, %v96
  %v115 = vpop.permute.xlu0 %114
  %118 = vset.pattern.permute.xlu0 0
  %119 = vperm.xlu0 %118, %v97
  %v120 = vpop.permute.xlu0 %119
  %123 = vset.pattern.permute.xlu0 0
  %124 = vperm.xlu0 %123, %v98
  %v125 = vpop.permute.xlu0 %124
  %128 = vset.pattern.permute.xlu0 0
  %129 = vperm.xlu0 %128, %v99
  %v130 = vpop.permute.xlu0 %129
  %133 = vset.pattern.permute.xlu0 0
  %134 = vperm.xlu0 %133, %v100
  %v135 = vpop.permute.xlu0 %134
  %138 = vset.pattern.permute.xlu0 0
  %139 = vperm.xlu0 %138, %v101
  %v140 = vpop.permute.xlu0 %139
  %v142 = vmul.f32 %v86, %v105
  %v143 = vmul.f32 %v87, %v110
  %v144 = vmul.f32 %v88, %v115
  %v145 = vmul.f32 %v89, %v120
  %v146 = vmul.f32 %v90, %v125
  %v147 = vmul.f32 %v91, %v130
  %v148 = vmul.f32 %v92, %v135
  %v149 = vmul.f32 %v93, %v140
  %v150 = vadd.f32 %v142, %v143
  %v151 = vadd.f32 %v150, %v144
  %v152 = vadd.f32 %v151, %v145
  %v153 = vadd.f32 %v152, %v146
  %v154 = vadd.f32 %v153, %v147
  %v155 = vadd.f32 %v154, %v148
  %v156 = vadd.f32 %v155, %v149
  %v157 = vrot.slane %v156, 4
  %v158 = vadd.f32 %v156, %v157
  %v159 = vrot.slane %v158, 2
  %v160 = vadd.f32 %v158, %v159
  %v161 = vrot.slane %v160, 1
  %v162 = vadd.f32 %v160, %v161
  %v163 = vld [vmem:[%s1] sm:$0xf]
  %v164 = vld [vmem:[%s1 + $0x4] sm:$0xf]
  %v165 = vld [vmem:[%s1 + $0x8] sm:$0xf]
  %v166 = vld [vmem:[%s1 + $0xc] sm:$0xf]
  %v167 = vld [vmem:[%s1 + $0x10] sm:$0xf]
  %v168 = vld [vmem:[%s1 + $0x14] sm:$0xf]
  %v169 = vld [vmem:[%s1 + $0x18] sm:$0xf]
  %v170 = vld [vmem:[%s1 + $0x1c] sm:$0xf]
  %v171 = vld [vmem:[%s2] sm:$0xff]
  %v172 = vld [vmem:[%s2 + $0x8] sm:$0xff]
  %v173 = vld [vmem:[%s2 + $0x10] sm:$0xff]
  %v174 = vld [vmem:[%s2 + $0x18] sm:$0xff]
  %v175 = vld [vmem:[%s2 + $0x20] sm:$0xff]
  %v176 = vld [vmem:[%s2 + $0x28] sm:$0xff]
  %v177 = vld [vmem:[%s2 + $0x30] sm:$0xff]
  %v178 = vld [vmem:[%s2 + $0x38] sm:$0xff]
  %180 = vset.pattern.permute.xlu0 0
  %181 = vperm.xlu0 %180, %v171
  %v182 = vpop.permute.xlu0 %181
  %185 = vset.pattern.permute.xlu0 0
  %186 = vperm.xlu0 %185, %v172
  %v187 = vpop.permute.xlu0 %186
  %190 = vset.pattern.permute.xlu0 0
  %191 = vperm.xlu0 %190, %v173
  %v192 = vpop.permute.xlu0 %191
  %195 = vset.pattern.permute.xlu0 0
  %196 = vperm.xlu0 %195, %v174
  %v197 = vpop.permute.xlu0 %196
  %200 = vset.pattern.permute.xlu0 0
  %201 = vperm.xlu0 %200, %v175
  %v202 = vpop.permute.xlu0 %201
  %205 = vset.pattern.permute.xlu0 0
  %206 = vperm.xlu0 %205, %v176
  %v207 = vpop.permute.xlu0 %206
  %210 = vset.pattern.permute.xlu0 0
  %211 = vperm.xlu0 %210, %v177
  %v212 = vpop.permute.xlu0 %211
  %215 = vset.pattern.permute.xlu0 0
  %216 = vperm.xlu0 %215, %v178
  %v217 = vpop.permute.xlu0 %216
  %v227 = vunpack.c.l.b16 %v163
  %v228 = vunpack.c.l.b16 %v164
  %v229 = vunpack.c.l.b16 %v165
  %v230 = vunpack.c.l.b16 %v166
  %v231 = vunpack.c.l.b16 %v167
  %v232 = vunpack.c.l.b16 %v168
  %v233 = vunpack.c.l.b16 %v169
  %v234 = vunpack.c.l.b16 %v170
  %v235 = vpack.c.b16 %v228, %v227
  %v236 = vpack.c.b16 %v230, %v229
  %v237 = vpack.c.b16 %v232, %v231
  %v238 = vpack.c.b16 %v234, %v233
  %v259 = vunpack.c.l.b16 %v54
  %v260 = vunpack.c.l.b16 %v55
  %v261 = vunpack.c.l.b16 %v56
  %v262 = vunpack.c.l.b16 %v57
  %v263 = vunpack.c.l.b16 %v58
  %v264 = vunpack.c.l.b16 %v59
  %v265 = vunpack.c.l.b16 %v60
  %v266 = vunpack.c.l.b16 %v61
  %v267 = vunpack.c.l.b16 %v62
  %v268 = vunpack.c.l.b16 %v63
  %v269 = vunpack.c.l.b16 %v64
  %v270 = vunpack.c.l.b16 %v65
  %v271 = vunpack.c.l.b16 %v66
  %v272 = vunpack.c.l.b16 %v67
  %v273 = vunpack.c.l.b16 %v68
  %v274 = vunpack.c.l.b16 %v69
  %v275 = vpack.c.b16 %v260, %v259
  %v276 = vpack.c.b16 %v262, %v261
  %v277 = vpack.c.b16 %v264, %v263
  %v278 = vpack.c.b16 %v266, %v265
  %v279 = vpack.c.b16 %v268, %v267
  %v280 = vpack.c.b16 %v270, %v269
  %v281 = vpack.c.b16 %v272, %v271
  %v282 = vpack.c.b16 %v274, %v273
  %291 = vmatprep.subr.bf16.mxu0 0
  %292 = vmatpush1.bf16.msra.mxu0 %v275
  %293 = vmatprep.subr.bf16.mxu0 0
  %294 = vmatpush1.bf16.msra.mxu0 %v276
  %295 = vmatprep.subr.bf16.mxu0 0
  %296 = vmatpush1.bf16.msra.mxu0 %v277
  %297 = vmatprep.subr.bf16.mxu0 0
  %298 = vmatpush1.bf16.msra.mxu0 %v278
  %299 = vmatprep.subr.bf16.mxu0 0
  %300 = vmatpush1.bf16.msra.mxu0 %v279
  %301 = vmatprep.subr.bf16.mxu0 0
  %302 = vmatpush1.bf16.msra.mxu0 %v280
  %303 = vmatprep.subr.bf16.mxu0 0
  %304 = vmatpush1.bf16.msra.mxu0 %v281
  %305 = vmatprep.subr.bf16.mxu0 0
  %306 = vmatpush1.bf16.msra.mxu0 %v282
  %307 = vmatprep.subr.bf16.mxu0 0
  %308 = vmatpush1.bf16.msra.mxu0 0
  %309 = vmatprep.subr.bf16.mxu0 0
  %310 = vmatpush1.bf16.msra.mxu0 0
  %311 = vmatprep.subr.bf16.mxu0 0
  %312 = vmatpush1.bf16.msra.mxu0 0
  %313 = vmatprep.subr.bf16.mxu0 0
  %314 = vmatpush1.bf16.msra.mxu0 0
  %315 = vmatprep.subr.bf16.mxu0 0
  %316 = vmatpush1.bf16.msra.mxu0 0
  %317 = vmatprep.subr.bf16.mxu0 0
  %318 = vmatpush1.bf16.msra.mxu0 0
  %319 = vmatprep.subr.bf16.mxu0 0
  %320 = vmatpush1.bf16.msra.mxu0 0
  %321 = vmatprep.subr.bf16.mxu0 0
  %322 = vmatpush1.bf16.msra.mxu0 0
  %323 = vmatprep.mubr.bf16.mxu0 0
  %324 = vmatmul.mubr.bf16.gmra.mrb[0].mxu0 %v235
  %v325 = vpop.f32.mrb[0].mxu0
  %v326 = vadd.f32 %v182, %v325
  %v327 = vpop.f32.mrb[0].mxu0
  %v328 = vpop.f32.mrb[0].mxu0
  %v329 = vadd.f32 %v187, %v328
  %v330 = vpop.f32.mrb[0].mxu0
  %331 = vmatprep.mubr.bf16.mxu0 0
  %332 = vmatmul.mubr.bf16.gmra.mrb[0].mxu0 %v236
  %v333 = vpop.f32.mrb[0].mxu0
  %v334 = vadd.f32 %v192, %v333
  %v335 = vpop.f32.mrb[0].mxu0
  %v336 = vpop.f32.mrb[0].mxu0
  %v337 = vadd.f32 %v197, %v336
  %v338 = vpop.f32.mrb[0].mxu0
  %339 = vmatprep.mubr.bf16.mxu0 0
  %340 = vmatmul.mubr.bf16.gmra.mrb[0].mxu0 %v237
  %v341 = vpop.f32.mrb[0].mxu0
  %v342 = vadd.f32 %v202, %v341
  %v343 = vpop.f32.mrb[0].mxu0
  %v344 = vpop.f32.mrb[0].mxu0
  %v345 = vadd.f32 %v207, %v344
  %v346 = vpop.f32.mrb[0].mxu0
  %347 = vmatprep.mubr.bf16.mxu0 0
  %348 = vmatmul.mubr.bf16.gmra.mrb[0].mxu0 %v238
  %v349 = vpop.f32.mrb[0].mxu0
  %v350 = vadd.f32 %v212, %v349
  %v351 = vpop.f32.mrb[0].mxu0
  %v352 = vpop.f32.mrb[0].mxu0
  %v353 = vadd.f32 %v217, %v352
  %v354 = vpop.f32.mrb[0].mxu0
  %355 = vdwg.mxu0
  %v356 = vmax.f32 %v326, 0.0
  %v357 = vmax.f32 %v329, 0.0
  %v358 = vmax.f32 %v334, 0.0
  %v359 = vmax.f32 %v337, 0.0
  %v360 = vmax.f32 %v342, 0.0
  %v361 = vmax.f32 %v345, 0.0
  %v362 = vmax.f32 %v350, 0.0
  %v363 = vmax.f32 %v353, 0.0
  %v364 = vld [vmem:[%s3] sm:$0xf]
  %v365 = vld [vmem:[%s3 + $0x4] sm:$0xf]
  %v366 = vld [vmem:[%s3 + $0x8] sm:$0xf]
  %v367 = vld [vmem:[%s3 + $0xc] sm:$0xf]
  %v368 = vpack.c.bf16 %v357, %v356
  %v369 = vpack.c.bf16 %v359, %v358
  %v370 = vpack.c.bf16 %v361, %v360
  %v371 = vpack.c.bf16 %v363, %v362
  %v372 = vld [vmem:[%s4] sm:$0xff]
  %v373 = vld [vmem:[%s4 + $0x8] sm:$0xff]
  %v374 = vld [vmem:[%s4 + $0x10] sm:$0xff]
  %v375 = vld [vmem:[%s4 + $0x18] sm:$0xff]
  %377 = vset.pattern.permute.xlu0 0
  %378 = vperm.xlu0 %377, %v372
  %v379 = vpop.permute.xlu0 %378
  %382 = vset.pattern.permute.xlu0 0
  %383 = vperm.xlu0 %382, %v373
  %v384 = vpop.permute.xlu0 %383
  %387 = vset.pattern.permute.xlu0 0
  %388 = vperm.xlu0 %387, %v374
  %v389 = vpop.permute.xlu0 %388
  %392 = vset.pattern.permute.xlu0 0
  %393 = vperm.xlu0 %392, %v375
  %v394 = vpop.permute.xlu0 %393
  %v400 = vunpack.c.l.b16 %v364
  %v401 = vunpack.c.l.b16 %v365
  %v402 = vunpack.c.l.b16 %v366
  %v403 = vunpack.c.l.b16 %v367
  %v404 = vpack.c.b16 %v401, %v400
  %v405 = vpack.c.b16 %v403, %v402
  %vm406 = vcmask 523264
  %v408 = vsel %vm406, %v404, 0
  %v411 = vsel %vm406, %v405, 0
  %413 = vmatprep.subr.bf16.mxu0 0
  %414 = vmatpush1.bf16.msra.mxu0 %v368
  %415 = vmatprep.subr.bf16.mxu0 0
  %416 = vmatpush1.bf16.msra.mxu0 %v369
  %417 = vmatprep.subr.bf16.mxu0 0
  %418 = vmatpush1.bf16.msra.mxu0 %v370
  %419 = vmatprep.subr.bf16.mxu0 0
  %420 = vmatpush1.bf16.msra.mxu0 %v371
  %421 = vmatprep.subr.bf16.mxu0 0
  %422 = vmatpush1.bf16.msra.mxu0 0
  %423 = vmatprep.subr.bf16.mxu0 0
  %424 = vmatpush1.bf16.msra.mxu0 0
  %425 = vmatprep.subr.bf16.mxu0 0
  %426 = vmatpush1.bf16.msra.mxu0 0
  %427 = vmatprep.subr.bf16.mxu0 0
  %428 = vmatpush1.bf16.msra.mxu0 0
  %429 = vmatprep.subr.bf16.mxu0 0
  %430 = vmatpush1.bf16.msra.mxu0 0
  %431 = vmatprep.subr.bf16.mxu0 0
  %432 = vmatpush1.bf16.msra.mxu0 0
  %433 = vmatprep.subr.bf16.mxu0 0
  %434 = vmatpush1.bf16.msra.mxu0 0
  %435 = vmatprep.subr.bf16.mxu0 0
  %436 = vmatpush1.bf16.msra.mxu0 0
  %437 = vmatprep.subr.bf16.mxu0 0
  %438 = vmatpush1.bf16.msra.mxu0 0
  %439 = vmatprep.subr.bf16.mxu0 0
  %440 = vmatpush1.bf16.msra.mxu0 0
  %441 = vmatprep.subr.bf16.mxu0 0
  %442 = vmatpush1.bf16.msra.mxu0 0
  %443 = vmatprep.subr.bf16.mxu0 0
  %444 = vmatpush1.bf16.msra.mxu0 0
  %445 = vmatprep.mubr.bf16.mxu0 0
  %446 = vmatmul.mubr.bf16.gmra.mrb[0].mxu0 %v408
  %v447 = vpop.f32.mrb[0].mxu0
  %v448 = vadd.f32 %v379, %v447
  %v449 = vpop.f32.mrb[0].mxu0
  %v450 = vpop.f32.mrb[0].mxu0
  %v451 = vadd.f32 %v384, %v450
  %v452 = vpop.f32.mrb[0].mxu0
  %453 = vmatprep.mubr.bf16.mxu0 0
  %454 = vmatmul.mubr.bf16.gmra.mrb[0].mxu0 %v411
  %v455 = vpop.f32.mrb[0].mxu0
  %v456 = vadd.f32 %v389, %v455
  %v457 = vpop.f32.mrb[0].mxu0
  %v458 = vpop.f32.mrb[0].mxu0
  %v459 = vadd.f32 %v394, %v458
  %v460 = vpop.f32.mrb[0].mxu0
  %461 = vdwg.mxu0
  %v462 = vmax.f32 %v448, 0.0
  %v463 = vmax.f32 %v451, 0.0
  %v464 = vmax.f32 %v456, 0.0
  %v465 = vmax.f32 %v459, 0.0
  %v466 = vld [vmem:[%s5] sm:$0xf]
  %v467 = vld [vmem:[%s5 + $0x4] sm:$0xf]
  %v468 = vpack.c.bf16 %v463, %v462
  %v469 = vpack.c.bf16 %v465, %v464
  %v470 = vld [vmem:[%s6] sm:$0xff]
  %v471 = vld [vmem:[%s6 + $0x8] sm:$0xff]
  %473 = vset.pattern.permute.xlu0 0
  %474 = vperm.xlu0 %473, %v470
  %v475 = vpop.permute.xlu0 %474
  %478 = vset.pattern.permute.xlu0 0
  %479 = vperm.xlu0 %478, %v471
  %v480 = vpop.permute.xlu0 %479
  %v484 = vunpack.c.l.b16 %v466
  %v485 = vunpack.c.l.b16 %v467
  %v486 = vpack.c.b16 %v485, %v484
  %vm487 = vcmask 261120
  %v489 = vsel %vm487, %v486, 0
  %491 = vmatprep.subr.bf16.mxu0 0
  %492 = vmatpush1.bf16.msra.mxu0 %v468
  %493 = vmatprep.subr.bf16.mxu0 0
  %494 = vmatpush1.bf16.msra.mxu0 %v469
  %495 = vmatprep.subr.bf16.mxu0 0
  %496 = vmatpush1.bf16.msra.mxu0 0
  %497 = vmatprep.subr.bf16.mxu0 0
  %498 = vmatpush1.bf16.msra.mxu0 0
  %499 = vmatprep.subr.bf16.mxu0 0
  %500 = vmatpush1.bf16.msra.mxu0 0
  %501 = vmatprep.subr.bf16.mxu0 0
  %502 = vmatpush1.bf16.msra.mxu0 0
  %503 = vmatprep.subr.bf16.mxu0 0
  %504 = vmatpush1.bf16.msra.mxu0 0
  %505 = vmatprep.subr.bf16.mxu0 0
  %506 = vmatpush1.bf16.msra.mxu0 0
  %507 = vmatprep.subr.bf16.mxu0 0
  %508 = vmatpush1.bf16.msra.mxu0 0
  %509 = vmatprep.subr.bf16.mxu0 0
  %510 = vmatpush1.bf16.msra.mxu0 0
  %511 = vmatprep.subr.bf16.mxu0 0
  %512 = vmatpush1.bf16.msra.mxu0 0
  %513 = vmatprep.subr.bf16.mxu0 0
  %514 = vmatpush1.bf16.msra.mxu0 0
  %515 = vmatprep.subr.bf16.mxu0 0
  %516 = vmatpush1.bf16.msra.mxu0 0
  %517 = vmatprep.subr.bf16.mxu0 0
  %518 = vmatpush1.bf16.msra.mxu0 0
  %519 = vmatprep.subr.bf16.mxu0 0
  %520 = vmatpush1.bf16.msra.mxu0 0
  %521 = vmatprep.subr.bf16.mxu0 0
  %522 = vmatpush1.bf16.msra.mxu0 0
  %523 = vmatprep.mubr.bf16.mxu0 0
  %524 = vmatmul.mubr.bf16.gmra.mrb[0].mxu0 %v489
  %v525 = vpop.f32.mrb[0].mxu0
  %v526 = vadd.f32 %v475, %v525
  %v527 = vpop.f32.mrb[0].mxu0
  %v528 = vpop.f32.mrb[0].mxu0
  %v529 = vadd.f32 %v480, %v528
  %v530 = vpop.f32.mrb[0].mxu0
  %531 = vdwg.mxu0
  %v532 = vmax.f32 %v526, 0.0
  %v533 = vmax.f32 %v529, 0.0
  %v534 = vld [vmem:[%s8] sm:$0xff]
  %v535 = vld [vmem:[%s8 + $0x8] sm:$0xff]
  %537 = vset.pattern.permute.xlu0 0
  %538 = vperm.xlu0 %537, %v534
  %v539 = vpop.permute.xlu0 %538
  %542 = vset.pattern.permute.xlu0 0
  %543 = vperm.xlu0 %542, %v535
  %v544 = vpop.permute.xlu0 %543
  %v546 = vmul.f32 %v532, %v539
  %v547 = vmul.f32 %v533, %v544
  %v548 = vadd.f32 %v546, %v547
  %v549 = vrot.slane %v548, 4
  %v550 = vadd.f32 %v548, %v549
  %v551 = vrot.slane %v550, 2
  %v552 = vadd.f32 %v550, %v551
  %v553 = vrot.slane %v552, 1
  %v554 = vadd.f32 %v552, %v553
  %v555 = vadd.f32 %v162, %v554
  %v556 = vld [vmem:[#allocation2] sm:$0x1]
  %558 = vset.pattern.permute.xlu0 0
  %559 = vperm.xlu0 %558, %v556
  %v560 = vpop.permute.xlu0 %559
  %v562 = vlaneseq
  %v563 = vshrl.u32 %v562, 7
  %v564 = vsub.s32 0, %v563
  %v565 = vrot.slane %v560, %v564
  %v566 = vadd.f32 %v555, %v565
  %v567 = vsub.f32 0.0, %v566
  %v568 = vmul.f32 %v567, 1.442695
  %v569 = vpow.pop %v568
  %v570 = vadd.f32 %v569, 1.0
  %v571 = vrcp.pop %v570
  %572 = vst [vmem:[%s10] sm:$0x1] %v571
  // Predicated region
  $region42: #{neumf_forward.1} parent=0 // pred_check
    _
  $region43: #{neumf_forward.1} parent=0 // pred_check_branch
    %574 = sbr.rel (0) target = $region45
  $region44: #{neumf_forward.1} parent=0 // pred_region
    _
  $region45: #{neumf_forward.1} parent=0 // pred_fallthru
    _
  // Predicated region
  $region46: #{neumf_forward.1} parent=0 // pred_check
    _
  $region47: #{neumf_forward.1} parent=0 // pred_check_branch
    %576 = sbr.rel (0) target = $region49
  $region48: #{neumf_forward.1} parent=0 // pred_region
    _
  $region49: #{neumf_forward.1} parent=0 // pred_fallthru
    _

</llo_original>
